<compile_context>
chip_gen: v5e
topology: v5e:2x2
jax: 0.10.0
libtpu: 0.0.40
codegen_flags: <defaults>
</compile_context>

<pallas_src>
import functools

import jax
import jax.numpy as jnp
from jax.experimental import pallas as pl
from jax.experimental.pallas import tpu as pltpu


def _round_up(x, m):
    return ((x + m - 1) // m) * m


def _vmem_capacity_bytes():
    """Generation-aware VMEM capacity (v5e/v6e: 128 MiB, v7x: 64 MiB per TC)."""
    try:
        return int(pltpu.get_tpu_info().vmem_capacity_bytes)
    except Exception:
        return 64 * 1024 * 1024  # conservative (v7x-sized) fallback


def _sublane_pack(itemsize):
    """Native sublane packing: 8 rows for 4-byte, 16 for 2-byte, 32 for 1-byte dtypes."""
    return max(8, 32 // max(1, int(itemsize)))


def _choose_tile_rows(n_rows, n_cols, in_itemsize, vmem_limit_bytes, pack):
    """Row-tile size budgeted against the full in-kernel VMEM working set."""
    # Per-row VMEM footprint:
    #   2 double-buffered input blocks              : 2 * C * itemsize
    #   ~7 (TN, C) f32/i32 intermediates            : 7 * C * 4
    #   target block (lane-padded to 128), 2 buffers: 2 * 128 * 4
    bytes_per_row = 2 * n_cols * in_itemsize + 7 * n_cols * 4 + 2 * 128 * 4
    budget_rows = max(pack, vmem_limit_bytes // bytes_per_row)
    # Hard cap of ~4 MiB on the x block: beyond ~512-1024 rows there is no measurable
    # bandwidth gain, only compile/spill risk (esp. on v7x's 64 MiB VMEM).
    cap_rows = max(pack, (4 * 1024 * 1024) // (n_cols * in_itemsize))
    tr = min(budget_rows, cap_rows, _round_up(n_rows, pack))
    return max(pack, (tr // pack) * pack)


def label_smoothing_kernel(x_ref, tgt_ref, partial_ref, *, confidence, smoothing,
                           n_rows, tile_rows):
    """One row tile: log-softmax + smoothed NLL, writes one per-tile partial sum."""
    i = pl.program_id(0)

    x = x_ref[...].astype(jnp.float32)          # (TN, C); no-op cast for f32 inputs
    tgt = tgt_ref[...]                          # (TN, 1) int32
    tn, c = x.shape

    # Stable log-sum-exp.  Padded tail rows may hold stale/garbage VMEM; they are
    # discarded by the final per-row mask below (jnp.where never propagates the
    # unselected branch), so no full-tile input mask is needed.
    m = jnp.max(x, axis=-1, keepdims=True)                               # (TN, 1)
    lse = m + jnp.log(jnp.sum(jnp.exp(x - m), axis=-1, keepdims=True))   # (TN, 1)
    # TODO(synk): if profiling shows the EUP (exp) binding on v6e/v7x after the VALU
    # trims, compute exp(x - m) in bf16 and accumulate the lane sum in f32.

    # Loss per row:
    #   conf*(lse - x[tgt]) + s*(lse - mean(x))  =  lse - (s/C)*sum(x) - conf*x[tgt]
    # Implemented as two lane reductions (XLU) + one compare/select (VALU) instead of
    # building the fused (s/C + conf*onehot) weight matrix (which costs 2 extra VALU
    # passes on the binding slot).
    col = jax.lax.broadcasted_iota(jnp.int32, x.shape, 1)                # (TN, C)
    sum_x = jnp.sum(x, axis=-1, keepdims=True)                           # (TN, 1)
    # TODO(synk): if XLU becomes the binding slot, offload sum_x to the idle MXU via
    # jnp.dot(x.astype(jnp.bfloat16), ones((C, 1)), preferred_element_type=f32).
    gathered = jnp.sum(jnp.where(col == tgt, x, 0.0), axis=-1, keepdims=True)
    per_row = (lse
               - jnp.float32(smoothing / c) * sum_x
               - jnp.float32(confidence) * gathered)                     # (TN, 1)

    # Mask padded tail rows (must stay — it is what makes dropping the input mask safe).
    row_ids = i * tile_rows + jax.lax.broadcasted_iota(jnp.int32, (tn, 1), 0)
    per_row = jnp.where(row_ids < n_rows, per_row, 0.0)

    partial_ref[0, 0] = jnp.sum(per_row)        # per-tile partial (no cross-step carry)


def label_smoothing_loss(x, target, smoothing=0.1, tile_rows=None):
    """Equivalent of LabelSmoothing(smoothing)(x, target) with statistics=False."""
    N, C = x.shape
    itemsize = jnp.dtype(x.dtype).itemsize
    pack = _sublane_pack(itemsize)

    vmem_cap = _vmem_capacity_bytes()
    # Keep the scoped limit at cap//2 (== default 32 MiB on v7x); tiles are sized to fit.
    vmem_limit = int(vmem_cap // 2)

    if tile_rows is None:
        tile_rows = _choose_tile_rows(N, C, itemsize, vmem_limit, pack)
    else:
        tile_rows = max(pack, min(_round_up(tile_rows, pack), _round_up(N, pack)))

    num_tiles = pl.cdiv(N, tile_rows)
    # TODO(synk): targets are passed as (N, 1) int32 and lane-pad to 128 in VMEM (cost is
    # included in the tile budget).  A lane-dense (num_tiles, tile_rows) layout with an
    # in-kernel relayout would cut that footprint ~128x for small-C / huge-tile cases.
    target_2d = target.reshape(N, 1).astype(jnp.int32)

    kernel = functools.partial(
        label_smoothing_kernel,
        confidence=1.0 - smoothing,
        smoothing=smoothing,
        n_rows=N,
        tile_rows=tile_rows,
    )

    partials = pl.pallas_call(
        kernel,
        out_shape=jax.ShapeDtypeStruct((num_tiles, 1), jnp.float32),
        grid_spec=pltpu.PrefetchScalarGridSpec(
            num_scalar_prefetch=0,
            grid=(num_tiles,),
            in_specs=[
                # TODO(synk): sweep pipeline_mode=pl.Buffered(3) here once per-block DMA
                # time (~1-2 MiB blocks) approaches the ~0.35us per-step overhead.
                pl.BlockSpec((tile_rows, C), lambda i: (i, 0)),
                pl.BlockSpec((tile_rows, 1), lambda i: (i, 0)),
            ],
            out_specs=pl.BlockSpec(
                (1, 1), lambda i: (i, 0), memory_space=pltpu.MemorySpace.SMEM
            ),
        ),
        compiler_params=pltpu.CompilerParams(
            # Independent tiles; "parallel" lets megacore/v7x shard the axis across TCs.
            # TODO(synk): if a v7x trace shows one TC idle, switch to pltpu.CORE_PARALLEL.
            dimension_semantics=("parallel",),
            vmem_limit_bytes=vmem_limit,
        ),
    )(x, target_2d)

    # Final tiny reduction + mean outside the kernel (keeps the grid fully parallel and
    # avoids a serial SMEM read-modify-write on the critical loop).
    return jnp.sum(partials) / jnp.float32(N)


def _reference(x, target, smoothing):
    # Pure-JAX reference mirroring the PyTorch module (statistics=False path).
    logprobs = jax.nn.log_softmax(x.astype(jnp.float32), axis=-1)
    nll = -jnp.take_along_axis(logprobs, target[:, None], axis=-1)[:, 0]
    smooth = -jnp.mean(logprobs, axis=-1)
    return jnp.mean((1.0 - smoothing) * nll + smoothing * smooth)


# TODO(synk): the `statistics=True` branch (per-example loss dict) is not returned; only
# the scalar mean loss (the default forward output) is computed in-kernel.
# TODO(synk): for vocab-scale C (>64K) a second grid axis over C with an online logsumexp
# would be needed; current kernel assumes one row tile holds all of C.

if __name__ == "__main__":
    key = jax.random.PRNGKey(0)
    kx, kt = jax.random.split(key)
    N, C = 10, 32          # N not a multiple of 8 -> exercises the masked tail rows
    smoothing = 0.1

    x = jax.random.normal(kx, (N, C), dtype=jnp.float32)
    target = jax.random.randint(kt, (N,), 0, C, dtype=jnp.int32)

    loss = jax.block_until_ready(label_smoothing_loss(x, target, smoothing=smoothing))

    ref = _reference(x, target, smoothing)
    assert jnp.allclose(loss, ref, atol=1e-5, rtol=1e-5), (loss, ref)
    print("KERNEL_OK")
</pallas_src>

<mosaic_0001>
module attributes {stable_mosaic.version = 11 : i64} {
  func.func @label_smoothing_kernel(%arg0: i32, %arg1: memref<16x32xf32, #tpu.memory_space<vmem>>, %arg2: memref<16x1xi32, #tpu.memory_space<vmem>>, %arg3: memref<1x1xf32, #tpu.memory_space<smem>>) attributes {dimension_semantics = [#tpu.dimension_semantics<parallel>], iteration_bounds = array<i64: 1>, scalar_prefetch = 0 : i64, scratch_operands = 0 : i64, tpu.core_type = #tpu.core_type<tc>, window_params = [{transform_indices = @transform_0, window_bounds = array<i64: 16, 32>}, {transform_indices = @transform_1, window_bounds = array<i64: 16, 1>}, {transform_indices = @transform_2, window_bounds = array<i64: 1, 1>}]} {
    %c0 = arith.constant 0 : index
    %c0_0 = arith.constant 0 : index
    %0 = vector.load %arg1[%c0, %c0_0] : memref<16x32xf32, #tpu.memory_space<vmem>>, vector<16x32xf32>
    %c0_1 = arith.constant 0 : index
    %c0_2 = arith.constant 0 : index
    %1 = vector.load %arg2[%c0_1, %c0_2] : memref<16x1xi32, #tpu.memory_space<vmem>>, vector<16x1xi32>
    %cst = arith.constant dense<0xFF800000> : vector<16xf32>
    %2 = vector.multi_reduction <maximumf>, %0, %cst [1] : vector<16x32xf32> to vector<16xf32>
    %3 = vector.shape_cast %2 : vector<16xf32> to vector<16x1xf32>
    %4 = vector.broadcast %3 : vector<16x1xf32> to vector<16x32xf32>
    %5 = arith.subf %0, %4 : vector<16x32xf32>
    %6 = math.exp %5 : vector<16x32xf32>
    %cst_3 = arith.constant dense<0.000000e+00> : vector<16xf32>
    %7 = vector.multi_reduction <add>, %6, %cst_3 [1] : vector<16x32xf32> to vector<16xf32>
    %8 = vector.shape_cast %7 : vector<16xf32> to vector<16x1xf32>
    %9 = math.log %8 : vector<16x1xf32>
    %10 = arith.addf %3, %9 : vector<16x1xf32>
    %11 = tpu.iota {dimensions = array<i32: 1>} : vector<16x32xi32>
    %cst_4 = arith.constant dense<0.000000e+00> : vector<16xf32>
    %12 = vector.multi_reduction <add>, %0, %cst_4 [1] : vector<16x32xf32> to vector<16xf32>
    %13 = vector.shape_cast %12 : vector<16xf32> to vector<16x1xf32>
    %14 = vector.broadcast %1 : vector<16x1xi32> to vector<16x32xi32>
    %15 = arith.cmpi eq, %11, %14 : vector<16x32xi32>
    %cst_5 = arith.constant 0.000000e+00 : f32
    %16 = vector.broadcast %cst_5 : f32 to vector<16x32xf32>
    %17 = arith.select %15, %0, %16 : vector<16x32xi1>, vector<16x32xf32>
    %cst_6 = arith.constant dense<0.000000e+00> : vector<16xf32>
    %18 = vector.multi_reduction <add>, %17, %cst_6 [1] : vector<16x32xf32> to vector<16xf32>
    %19 = vector.shape_cast %18 : vector<16xf32> to vector<16x1xf32>
    %cst_7 = arith.constant 3.125000e-03 : f32
    %20 = vector.broadcast %cst_7 : f32 to vector<16x1xf32>
    %21 = arith.mulf %20, %13 : vector<16x1xf32>
    %22 = arith.subf %10, %21 : vector<16x1xf32>
    %cst_8 = arith.constant 0.899999976 : f32
    %23 = vector.broadcast %cst_8 : f32 to vector<16x1xf32>
    %24 = arith.mulf %23, %19 : vector<16x1xf32>
    %25 = arith.subf %22, %24 : vector<16x1xf32>
    %c16_i32 = arith.constant 16 : i32
    %26 = arith.muli %arg0, %c16_i32 : i32
    %27 = tpu.iota {dimensions = array<i32: 0>} : vector<16x1xi32>
    %28 = vector.broadcast %26 : i32 to vector<16x1xi32>
    %29 = arith.addi %28, %27 : vector<16x1xi32>
    %c10_i32 = arith.constant 10 : i32
    %30 = vector.broadcast %c10_i32 : i32 to vector<16x1xi32>
    %31 = arith.cmpi slt, %29, %30 : vector<16x1xi32>
    %cst_9 = arith.constant 0.000000e+00 : f32
    %32 = vector.broadcast %cst_9 : f32 to vector<16x1xf32>
    %33 = arith.select %31, %25, %32 : vector<16x1xi1>, vector<16x1xf32>
    %34 = vector.shape_cast %33 : vector<16x1xf32> to vector<1x16x1xf32>
    %cst_10 = arith.constant dense<0.000000e+00> : vector<1xf32>
    %35 = vector.multi_reduction <add>, %34, %cst_10 [1, 2] : vector<1x16x1xf32> to vector<1xf32>
    %36 = vector.shape_cast %35 : vector<1xf32> to vector<1x1x1xf32>
    %37 = vector.extract %36[0, 0, 0] : f32 from vector<1x1x1xf32>
    %c0_11 = arith.constant 0 : index
    %c0_12 = arith.constant 0 : index
    %38 = memref.load %arg3[%c0_11, %c0_12] : memref<1x1xf32, #tpu.memory_space<smem>>
    memref.store %37, %arg3[%c0_11, %c0_12] : memref<1x1xf32, #tpu.memory_space<smem>>
    return
  }
  func.func @transform_0(%arg0: i32) -> (i32, i32) {
    %c0_i32 = arith.constant 0 : i32
    %c0_i32_0 = arith.constant 0 : i32
    return %arg0, %c0_i32 : i32, i32
  }
  func.func @transform_1(%arg0: i32) -> (i32, i32) {
    %c0_i32 = arith.constant 0 : i32
    %c0_i32_0 = arith.constant 0 : i32
    return %arg0, %c0_i32 : i32, i32
  }
  func.func @transform_2(%arg0: i32) -> (i32, i32) {
    %c0_i32 = arith.constant 0 : i32
    %c0_i32_0 = arith.constant 0 : i32
    return %arg0, %c0_i32 : i32, i32
  }
}

</mosaic_0001>

<llo_original>
// kernel: tpu_custom_call.1
$region0: #{tpu_custom_call.1}
  #allocation0 [shape = 'u32[]', space=smem, size = 0x4, offset = 0x4, fixed_abs, tag = 'smem constant byte address 0x4 - core index']
  #allocation1 [shape = 'u32[72,128]{1,0:T(1,128)}', space=vmem, size = 0x9000, scoped, tag = 'internal scratch']
  %s0 = inlined_call_operand.vmem [shape: f32[10,32], index: 0, kind: input, shape index: {}]
  %s1 = inlined_call_operand.vmem [shape: s32[10,1], index: 1, kind: input, shape index: {}]
  %s2 = inlined_call_operand.hbm [shape: f32[1,1], index: 2, kind: output, shape index: {}]
  %s3 = sld [smem:[#allocation0]]
  $region18: #{tpu_custom_call.1} parent=0
    _
  %s5 = ssub.s32 1, %s3
  %s6 = scalar_select 0, %s5, %s3
  $region1: #{tpu_custom_call.1} parent=0
    #allocation2 [shape = 'u8[512]{0}', space=smem, size = 0x200, scoped, tag = 'output window, operand 0, single buffered']
    #allocation3 [shape = 's32[1]{0}', space=sflag, size = 0x4, scoped, tag = 'scoped memory for tpu_custom_call.1']
    %7 = vsyncpa [#allocation3], 0
    // Predicated region
    $region2: #{tpu_custom_call.1} parent=1 // pred_check
      _
    $region3: #{tpu_custom_call.1} parent=1 // pred_check_branch
      %9 = sbr.rel (0) target = $region5
    $region4: #{tpu_custom_call.1} parent=1 // pred_region
      _
    $region5: #{tpu_custom_call.1} parent=1 // pred_fallthru
      _
    // Predicated region
    $region6: #{tpu_custom_call.1} parent=1 // pred_check
      _
    $region7: #{tpu_custom_call.1} parent=1 // pred_check_branch
      %11 = sbr.rel (0) target = $region9
    $region8: #{tpu_custom_call.1} parent=1 // pred_region
      _
    $region9: #{tpu_custom_call.1} parent=1 // pred_fallthru
      _
    %v12 = vld [vmem:[%s0] sm:$0xff]
    %v13 = vld [vmem:[%s0 + $0x8] sm:$0xff]
    %v14 = vld [vmem:[%s1] sm:$0xff]
    %v15 = vld [vmem:[%s1 + $0x8] sm:$0xff]
    %vm16 = vcmask 261120
    %v17 = vsel %vm16, %v12, -inf
    %18 = vmax.xlane.f32.xlu0 %v17
    %v19 = vpop.xlane.xlu0 %18
    %v20 = vsel %vm16, %v13, -inf
    %21 = vmax.xlane.f32.xlu0 %v20
    %v22 = vpop.xlane.xlu0 %21
    %v23 = vsub.f32 %v12, %v19
    %v24 = vsub.f32 %v13, %v22
    %v25 = vmul.f32 %v23, 1.442695
    %v26 = vpow.pop %v25
    %v27 = vmul.f32 %v24, 1.442695
    %v28 = vpow.pop %v27
    %v29 = vsel %vm16, %v26, 0.0
    %30 = vadd.xlane.f32.xlu0 %v29
    %v31 = vpop.xlane.xlu0 %30
    %v32 = vsel %vm16, %v28, 0.0
    %33 = vadd.xlane.f32.xlu0 %v32
    %v34 = vpop.xlane.xlu0 %33
    %v35 = vlog2.pop %v31
    %v36 = vmul.f32 %v35, 0.6931472
    %v37 = vlog2.pop %v34
    %v38 = vmul.f32 %v37, 0.6931472
    %v39 = vadd.f32 %v19, %v36
    %v40 = vadd.f32 %v22, %v38
    %v41 = vlaneseq
    %v42 = vand.u32 %v41, 127
    %v43 = vsel %vm16, %v12, 0.0
    %44 = vadd.xlane.f32.xlu0 %v43
    %v45 = vpop.xlane.xlu0 %44
    %v46 = vsel %vm16, %v13, 0.0
    %47 = vadd.xlane.f32.xlu0 %v46
    %v48 = vpop.xlane.xlu0 %47
    %49 = vset.pattern.permute.xlu0 0
    %50 = vperm.xlu0 %49, %v14
    %v51 = vpop.permute.xlu0 %50
    %52 = vset.pattern.permute.xlu0 0
    %53 = vperm.xlu0 %52, %v15
    %v54 = vpop.permute.xlu0 %53
    %vm55 = vcmp.eq.s32.totalorder %v42, %v51
    %vm56 = vcmp.eq.s32.totalorder %v42, %v54
    %v57 = vsel %vm55, %v12, 0.0
    %v58 = vsel %vm56, %v13, 0.0
    %v59 = vsel %vm16, %v57, 0.0
    %60 = vadd.xlane.f32.xlu0 %v59
    %v61 = vpop.xlane.xlu0 %60
    %v62 = vsel %vm16, %v58, 0.0
    %63 = vadd.xlane.f32.xlu0 %v62
    %v64 = vpop.xlane.xlu0 %63
    %v65 = vmul.f32 %v45, 0.003125
    %v66 = vmul.f32 %v48, 0.003125
    %v67 = vsub.f32 %v39, %v65
    %v68 = vsub.f32 %v40, %v66
    %v69 = vmul.f32 %v61, 0.9
    %v70 = vmul.f32 %v64, 0.9
    %v71 = vsub.f32 %v67, %v69
    %v72 = vsub.f32 %v68, %v70
    %s73 = smul.u32 0, 16
    %v74 = vlaneseq
    %v75 = vshrl.u32 %v74, 7
    %v76 = vadd.s32 %v75, 8
    %v77 = vstv %s73
    %v78 = vadd.s32 %v77, %v75
    %v79 = vadd.s32 %v77, %v76
    %vm80 = vcmp.lt.s32.totalorder %v78, 10
    %vm81 = vcmp.lt.s32.totalorder %v79, 10
    %v82 = vsel %vm80, %v71, 0.0
    %v83 = vsel %vm81, %v72, 0.0
    %vm84 = vcmask 7168
    %v85 = vsel %vm84, %v82, 0.0
    %v86 = vsel %vm84, %v83, 0.0
    %v87 = vadd.f32 %v85, %v86
    %88 = vadd.xlane.f32.xlu0 %v87
    %v89 = vpop.xlane.xlu0 %88
    %v90 = vrot.slane %v89, 4
    %v91 = vadd.f32 %v89, %v90
    %v92 = vrot.slane %v91, 2
    %v93 = vadd.f32 %v91, %v92
    %v94 = vrot.slane %v93, 1
    %v95 = vadd.f32 %v93, %v94
    %s96 = vtos %v95
    %s97 = scalar_lea.smem [#allocation2], 0
    %98 = sst [smem:[%s97]] %s96
    // Predicated region
    $region10: #{tpu_custom_call.1} parent=1 // pred_check
      _
    $region11: #{tpu_custom_call.1} parent=1 // pred_check_branch
      %100 = sbr.rel (0) target = $region13
    $region12: #{tpu_custom_call.1} parent=1 // pred_region
      %102 = vsyncadd [#allocation3], 0
      %s104 = sshll.u32 %s2, 4
      %s105 = int_to_ptr.hbm [resolvable:$true] %s104
      %107 = dma.smem_to_hbm [#allocation2], 16, %s105, [#allocation3]
    $region13: #{tpu_custom_call.1} parent=1 // pred_fallthru
      _
    // Predicated region
    $region14: #{tpu_custom_call.1} parent=1 // pred_check
      _
    $region15: #{tpu_custom_call.1} parent=1 // pred_check_branch
      %109 = sbr.rel (0) target = $region17
    $region16: #{tpu_custom_call.1} parent=1 // pred_region
      %111 = dma.done [#allocation3], 16
    $region17: #{tpu_custom_call.1} parent=1 // pred_fallthru
      _
    %112 = sfence
    %113 = vsyncpa [#allocation3], 1

</llo_original>
